<compile_context>
chip_gen: v7x
topology: tpu7x:2x2x1
jax: 0.10.0
libtpu: 0.0.40
codegen_flags: <defaults>
</compile_context>

<pallas_src>
import math

import jax
import jax.numpy as jnp
from jax.experimental import pallas as pl
from jax.experimental.pallas import tpu as pltpu


def _freq_mul_kernel(x_ref, f_ref, o_ref):
    # x_ref: (TM, L) row tile of the flattened sinogram
    # f_ref: (1, L)  resident filter slab (broadcast over the sublane axis)
    o_ref[...] = x_ref[...] * f_ref[...]


def _build_filter_1d(frq, num_detectors, dtype):
    # Mirrors the PyTorch construction exactly (even / odd detector counts).
    if num_detectors % 2 == 0:
        filter_1d = jnp.concatenate([frq[::-1], frq])
    else:
        filter_1d = jnp.concatenate([frq[::-1], frq[1:]])
    return filter_1d.astype(dtype)


def _choose_row_tile(rows, row_bytes, target_bytes=2 << 20, max_bytes=4 << 20):
    """Row tile: whole array as a single block when small, otherwise a multiple
    of 8 sized so one block is ~1-4 MiB (4x block bytes = pipelined footprint
    stays far below every chip generation's scoped VMEM limit)."""
    if rows * row_bytes <= max_bytes or rows <= 8:
        return rows
    tm = max(8, ((target_bytes // row_bytes) // 8) * 8)
    return min(tm, rows)


def trainable_frequency_response(x, trainable_sparse_response,
                                 num_detectors, number_of_projections):
    """Forward pass of TrainableFrequencyResponse as a Pallas TPU kernel.

    x: (B, P, D) array, P == number_of_projections, D == num_detectors
    trainable_sparse_response: (num_detectors // 2 + num_detectors % 2,)
    """
    B, P, D = x.shape
    assert P == number_of_projections and D == num_detectors

    filter_1d = _build_filter_1d(trainable_sparse_response, D, x.dtype)

    itemsize = jnp.dtype(x.dtype).itemsize
    total = B * P * D

    # Lane-dense fold: L = smallest multiple of D divisible by 128.  The
    # flattened element stream is periodic in the filter with period D, so a
    # (1, L) filter slab (filter tiled L//D times) reproduces the broadcast.
    lcm = (D * 128) // math.gcd(D, 128)
    if total % lcm == 0:
        L = lcm
        rows = total // L
        reps = L // D
    else:
        # Fallback: natural (B*P, D) rows (lane-masked stores if D % 128 != 0,
        # but always correct).
        L = D
        rows = B * P
        reps = 1

    x2 = x.reshape(rows, L)
    if reps > 1:
        filt = jnp.tile(filter_1d, reps).reshape(1, L)
    else:
        filt = filter_1d.reshape(1, L)

    tm = _choose_row_tile(rows, L * itemsize)
    grid = (pl.cdiv(rows, tm),)

    cost = pl.CostEstimate(
        flops=total,
        transcendentals=0,
        bytes_accessed=2 * total * itemsize + L * itemsize,
    )

    out2 = pl.pallas_call(
        _freq_mul_kernel,
        out_shape=jax.ShapeDtypeStruct((rows, L), x.dtype),
        grid=grid,
        in_specs=[
            pl.BlockSpec((tm, L), lambda i: (i, 0)),   # streamed row tile
            pl.BlockSpec((1, L), lambda i: (0, 0)),    # filter: loaded once, resident
        ],
        out_specs=pl.BlockSpec((tm, L), lambda i: (i, 0)),
        compiler_params=pltpu.CompilerParams(
            dimension_semantics=("parallel",)),
        cost_estimate=cost,
    )(x2, filt)

    return out2.reshape(B, P, D)


def _reference(x, frq, num_detectors, number_of_projections):
    # Pure-JAX reference mirroring the PyTorch forward exactly.
    if num_detectors % 2 == 0:
        filter_1d = jnp.concatenate([frq[::-1], frq])
    else:
        filter_1d = jnp.concatenate([frq[::-1], frq[1:]])
    filter_2d = jnp.tile(filter_1d[None, :], (number_of_projections, 1))
    return x * filter_2d


def _run_case(key, batch, num_detectors, number_of_projections,
              detector_spacing=1.0):
    half = num_detectors // 2 + num_detectors % 2
    ramp_value = 1.0 / (detector_spacing * detector_spacing)
    k_param, k_x = jax.random.split(key)
    frq = ramp_value * jax.random.uniform(k_param, (half,), dtype=jnp.float32)
    x = jax.random.normal(
        k_x, (batch, number_of_projections, num_detectors), dtype=jnp.float32)

    out = trainable_frequency_response(
        x, frq, num_detectors, number_of_projections)
    out = jax.block_until_ready(out)

    ref = _reference(x, frq, num_detectors, number_of_projections)
    assert out.shape == x.shape
    assert jnp.allclose(out, ref, atol=1e-6, rtol=1e-6)


if __name__ == "__main__":
    key = jax.random.PRNGKey(0)
    k0, k1, k2 = jax.random.split(key, 3)

    # Primary small case consistent with the module (even detector count,
    # D=16 < 128 -> exercises the lane-dense fold path, single grid point).
    _run_case(k0, batch=2, num_detectors=16, number_of_projections=16)

    # D multiple of 128 -> lane-dense path with reps == 1.
    _run_case(k1, batch=2, num_detectors=128, number_of_projections=8)

    # Odd detector count, fold does not divide -> fallback (B*P, D) path.
    _run_case(k2, batch=2, num_detectors=15, number_of_projections=16)

    print("KERNEL_OK")
</pallas_src>

<mosaic_0001>
module attributes {stable_mosaic.version = 11 : i64} {
  func.func @_freq_mul_kernel(%arg0: i32, %arg1: memref<4x128xf32, #tpu.memory_space<vmem>>, %arg2: memref<1x128xf32, #tpu.memory_space<vmem>>, %arg3: memref<4x128xf32, #tpu.memory_space<vmem>>) attributes {dimension_semantics = [#tpu.dimension_semantics<parallel>], iteration_bounds = array<i64: 1>, scalar_prefetch = 0 : i64, scratch_operands = 0 : i64, tpu.core_type = #tpu.core_type<tc>, window_params = [{transform_indices = @transform_0, window_bounds = array<i64: 4, 128>}, {pipeline_mode = #tpu.pipeline_mode<synchronous>, transform_indices = @transform_1, window_bounds = array<i64: 1, 128>}, {transform_indices = @transform_2, window_bounds = array<i64: 4, 128>}]} {
    %c0 = arith.constant 0 : index
    %c0_0 = arith.constant 0 : index
    %0 = vector.load %arg1[%c0, %c0_0] : memref<4x128xf32, #tpu.memory_space<vmem>>, vector<4x128xf32>
    %c0_1 = arith.constant 0 : index
    %c0_2 = arith.constant 0 : index
    %1 = vector.load %arg2[%c0_1, %c0_2] : memref<1x128xf32, #tpu.memory_space<vmem>>, vector<1x128xf32>
    %2 = vector.broadcast %1 : vector<1x128xf32> to vector<4x128xf32>
    %3 = arith.mulf %0, %2 : vector<4x128xf32>
    %c0_3 = arith.constant 0 : index
    %c0_4 = arith.constant 0 : index
    %4 = vector.load %arg3[%c0_3, %c0_4] : memref<4x128xf32, #tpu.memory_space<vmem>>, vector<4x128xf32>
    tpu.vector_store %arg3[%c0_3, %c0_4], %3 {strides = array<i32>} : memref<4x128xf32, #tpu.memory_space<vmem>>, vector<4x128xf32>,
    return
  }
  func.func @transform_0(%arg0: i32) -> (i32, i32) {
    %c0_i32 = arith.constant 0 : i32
    %c0_i32_0 = arith.constant 0 : i32
    return %arg0, %c0_i32 : i32, i32
  }
  func.func @transform_1(%arg0: i32) -> (i32, i32) {
    %c0_i32 = arith.constant 0 : i32
    %c0_i32_0 = arith.constant 0 : i32
    %c0_i32_1 = arith.constant 0 : i32
    return %c0_i32, %c0_i32_0 : i32, i32
  }
  func.func @transform_2(%arg0: i32) -> (i32, i32) {
    %c0_i32 = arith.constant 0 : i32
    %c0_i32_0 = arith.constant 0 : i32
    return %arg0, %c0_i32 : i32, i32
  }
}

</mosaic_0001>

<llo_original>
// kernel: tpu_custom_call.1
$region0: #{tpu_custom_call.1}
  #allocation0 [shape = 'u32[]', space=smem, size = 0x4, offset = 0x4, fixed_abs, tag = 'smem constant byte address 0x4 - core index']
  #allocation1 [shape = 'u32[144,128]{1,0:T(1,128)}', space=vmem, size = 0x12000, scoped, tag = 'internal scratch']
  %s0 = inlined_call_operand.hbm [shape: f32[4,128], index: 0, kind: input, shape index: {}]
  %s1 = inlined_call_operand.vmem [shape: f32[1,128], index: 1, kind: input, shape index: {}]
  %s2 = inlined_call_operand.hbm [shape: f32[4,128], index: 2, kind: output, shape index: {}]
  %s3 = sld [smem:[#allocation0]]
  $region22: #{tpu_custom_call.1} parent=0
    _
  %s5 = ssub.s32 1, %s3
  %s6 = scalar_select 0, %s5, %s3
  $region1: #{tpu_custom_call.1} parent=0
    #allocation2 [shape = 'u8[2048]{0}', space=vmem, size = 0x800, scoped, tag = 'input window, operand 0, single buffered']
    #allocation3 [shape = 's32[1]{0}', space=sflag, size = 0x4, scoped, tag = 'scoped memory for tpu_custom_call.1']
    #allocation4 [shape = 's32[1]{0}', space=sflag, size = 0x4, scoped, tag = 'scoped memory for tpu_custom_call.1']
    #allocation5 [shape = 'u8[2048]{0}', space=vmem, size = 0x800, scoped, tag = 'output window, operand 0, single buffered']
    %7 = vsyncpa [#allocation3], 0
    %8 = vsyncpa [#allocation4], 0
    // Predicated region
    $region2: #{tpu_custom_call.1} parent=1 // pred_check
      _
    $region3: #{tpu_custom_call.1} parent=1 // pred_check_branch
      %10 = sbr.rel (0) target = $region5
    $region4: #{tpu_custom_call.1} parent=1 // pred_region
      %s12 = ssub.s32 64, 64
      %13 = vsyncadd [#allocation3], %s12
      %s15 = sshll.u32 [#allocation2], 4
      %s16 = int_to_ptr.vmem [resolvable:$true] %s15
      %18 = dma.hbm_to_vmem [thread:$0]  %s0, 64, %s16, [#allocation3]
    $region5: #{tpu_custom_call.1} parent=1 // pred_fallthru
      _
    // Predicated region
    $region6: #{tpu_custom_call.1} parent=1 // pred_check
      _
    $region7: #{tpu_custom_call.1} parent=1 // pred_check_branch
      %20 = sbr.rel (0) target = $region9
    $region8: #{tpu_custom_call.1} parent=1 // pred_region
      _
    $region9: #{tpu_custom_call.1} parent=1 // pred_fallthru
      _
    // Predicated region
    $region10: #{tpu_custom_call.1} parent=1 // pred_check
      _
    $region11: #{tpu_custom_call.1} parent=1 // pred_check_branch
      %22 = sbr.rel (0) target = $region13
    $region12: #{tpu_custom_call.1} parent=1 // pred_region
      %23 = dma.done [#allocation3], 64
    $region13: #{tpu_custom_call.1} parent=1 // pred_fallthru
      _
    %v24 = vld [vmem:[#allocation2] sm:$0xf]
    %v25 = vld [vmem:[%s1] sm:$0x1]
    %v27 = vlaneseq
    %v28 = vshrl.u32 %v27, 7
    %v29 = vsub.s32 0, %v28
    %v30 = vrot.slane %v25, %v29
    %v32 = vmul.f32 %v24, %v30
    %33 = vst [vmem:[#allocation5] sm:$0xf] %v32
    // Predicated region
    $region14: #{tpu_custom_call.1} parent=1 // pred_check
      _
    $region15: #{tpu_custom_call.1} parent=1 // pred_check_branch
      %35 = sbr.rel (0) target = $region17
    $region16: #{tpu_custom_call.1} parent=1 // pred_region
      %s37 = ssub.s32 64, 64
      %38 = vsyncadd [#allocation4], %s37
      %s40 = sshll.u32 [#allocation5], 4
      %s41 = int_to_ptr.vmem [resolvable:$true] %s40
      %43 = dma.vmem_to_hbm [thread:$0]  %s41, 64, %s2, [#allocation4]
    $region17: #{tpu_custom_call.1} parent=1 // pred_fallthru
      _
    // Predicated region
    $region18: #{tpu_custom_call.1} parent=1 // pred_check
      _
    $region19: #{tpu_custom_call.1} parent=1 // pred_check_branch
      %45 = sbr.rel (0) target = $region21
    $region20: #{tpu_custom_call.1} parent=1 // pred_region
      %46 = dma.done [#allocation4], 64
    $region21: #{tpu_custom_call.1} parent=1 // pred_fallthru
      _
    %47 = vsyncpa [#allocation3], 1
    %48 = vsyncpa [#allocation4], 1

</llo_original>
